<compile_context>
chip_gen: v6e
topology: v6e:2x2x1
jax: 0.10.0
libtpu: 0.0.40
codegen_flags: <defaults>
</compile_context>

<pallas_src>
import functools
import math

import jax
import jax.numpy as jnp
from jax import lax
from jax.experimental import pallas as pl
from jax.experimental.pallas import tpu as pltpu

_LANE = 128
_SUBTILE = 32                   # sublane multiple legal for f32 / bf16 / int8 blocks
_TARGET_BLOCK_BYTES = 2 << 20   # ~2 MiB per input stream per block (review: 2-4 MiB)
_N_CORES = 2                    # TensorCore split on v7x; harmless loop of 2 on v5e/v6e
_MIN_BLOCKS_FOR_CORE_SPLIT = 5  # skip the core split (and its clamp) for small inputs


def _round_up(x, m):
    return ((x + m - 1) // m) * m


def _target_rows(itemsize):
    rows = _TARGET_BLOCK_BYTES // (_LANE * itemsize)
    return max(_SUBTILE, (rows // _SUBTILE) * _SUBTILE)


# ----------------------------------------------------------------------------
# kernels
# ----------------------------------------------------------------------------
def _sq_sum_kernel(x_ref, y_ref, out_ref, *, n_rows, block_rows,
                   blocks_per_core, needs_tail_mask):
    """Accumulate partial sums of (x-y)^2 into a (1,1,8,128) output block."""
    c = pl.program_id(1)          # TensorCore split (parallel)
    j = pl.program_id(2)          # row-block reduction (arbitrary)

    @pl.when(j == 0)
    def _():
        out_ref[...] = jnp.zeros_like(out_ref)

    d = x_ref[0].astype(jnp.float32) - y_ref[0].astype(jnp.float32)
    sq = d * d

    def _acc(vals):
        # (block_rows,128) -> (8,128) partial via pure vreg adds (tile-aligned
        # reshape); the single cross-lane reduce happens once, in the wrapper.
        out_ref[...] += vals.reshape(block_rows // 8, 8, _LANE).sum(axis=0)[None, None]

    if not needs_tail_mask:
        _acc(sq)
    else:
        block_start = (c * blocks_per_core + j) * block_rows
        is_interior = block_start + block_rows <= n_rows

        @pl.when(is_interior)
        def _():
            _acc(sq)                               # interior: no masking work at all

        @pl.when(jnp.logical_not(is_interior))
        def _():
            # Tail block (or duplicated clamped block): mask rows past the real
            # data. Select (not multiply) so undefined DMA padding can't leak.
            row = lax.broadcasted_iota(jnp.int32, (block_rows, _LANE), 0)
            _acc(jnp.where(row < n_rows - block_start, sq, 0.0))


def _masked_sq_sum_kernel(x_ref, y_ref, m_ref, sum_ref, cnt_ref, *,
                          n_rows, block_rows, blocks_per_core, needs_tail_mask):
    """Accumulate sum((x-y)^2 * m) and sum(m) partials."""
    c = pl.program_id(1)
    j = pl.program_id(2)

    @pl.when(j == 0)
    def _():
        sum_ref[...] = jnp.zeros_like(sum_ref)
        cnt_ref[...] = jnp.zeros_like(cnt_ref)

    d = x_ref[0].astype(jnp.float32) - y_ref[0].astype(jnp.float32)
    w = m_ref[0].astype(jnp.float32)
    sq = d * d

    def _acc(ref, vals):
        ref[...] += vals.reshape(block_rows // 8, 8, _LANE).sum(axis=0)[None, None]

    if not needs_tail_mask:
        _acc(sum_ref, sq * w)     # padding (if any) is zero-filled by the wrapper
        _acc(cnt_ref, w)
    else:
        block_start = (c * blocks_per_core + j) * block_rows
        is_interior = block_start + block_rows <= n_rows

        @pl.when(is_interior)
        def _():
            _acc(sum_ref, sq * w)
            _acc(cnt_ref, w)

        @pl.when(jnp.logical_not(is_interior))
        def _():
            row = lax.broadcasted_iota(jnp.int32, (block_rows, _LANE), 0)
            valid = row < n_rows - block_start
            _acc(sum_ref, jnp.where(valid, sq * w, 0.0))   # select kills OOB NaN
            _acc(cnt_ref, jnp.where(valid, w, 0.0))


# ----------------------------------------------------------------------------
# wrappers
# ----------------------------------------------------------------------------
def _prepare(arrs, b, m, block_rows_target):
    """arrs: list of (b, m) arrays -> (bulks (b,rows,128), tails-or-None, rows, block_rows)."""
    rows_exact = pl.cdiv(m, _LANE)
    if rows_exact <= block_rows_target:
        # Single block: pad (tiny) so everything is valid data or zeros.
        block_rows = _round_up(max(rows_exact, 1), _SUBTILE)
        padded = block_rows * _LANE
        bulks = []
        for a in arrs:
            if padded != m:
                a = jnp.pad(a, ((0, 0), (0, padded - m)))   # zero fill -> contributes 0
            bulks.append(a.reshape(b, block_rows, _LANE))
        return bulks, None, block_rows, block_rows
    rows = m // _LANE
    aligned = rows * _LANE
    if aligned == m:
        return [a.reshape(b, rows, _LANE) for a in arrs], None, rows, block_rows_target
    # Unaligned large input: kernel consumes the 128-aligned prefix; the <128
    # element tail is reduced in the wrapper (no whole-array zero-pad pass).
    # TODO(synk): the aligned-prefix slice may still cost one copy pass per
    # stream; a fully copy-free path needs a non-rectangular DMA BlockSpec
    # cannot express.
    bulks = [lax.slice(a, (0, 0), (b, aligned)).reshape(b, rows, _LANE) for a in arrs]
    tails = [lax.slice(a, (0, aligned), (b, m)) for a in arrs]
    return bulks, tails, rows, block_rows_target


def _partial_sums(kernel, bulks, n_out, rows, block_rows, b):
    total_blocks = pl.cdiv(rows, block_rows)
    n_cores = _N_CORES if total_blocks >= _MIN_BLOCKS_FOR_CORE_SPLIT else 1
    bpc = pl.cdiv(total_blocks, n_cores)
    max_block = total_blocks - 1
    needs_tail = (rows % block_rows != 0) or (n_cores * bpc != total_blocks)

    def in_map(i, c, j):
        # Clamp keeps the DMA in bounds; any duplicated coverage is zeroed by
        # the in-kernel row mask.
        return (i, jnp.minimum(c * bpc + j, max_block), 0)

    in_spec = pl.BlockSpec((1, block_rows, _LANE), in_map)
    out_spec = pl.BlockSpec((1, 1, 8, _LANE), lambda i, c, j: (i, c, 0, 0))
    out_sd = jax.ShapeDtypeStruct((b, n_cores, 8, _LANE), jnp.float32)

    # Raise the scoped-VMEM limit so 2 MiB blocks also fit v5e's 16 MiB default:
    # double-buffered input streams + generous headroom for f32 temporaries.
    in_bytes = sum(block_rows * _LANE * a.dtype.itemsize for a in bulks)
    f32_block = block_rows * _LANE * 4
    vmem_limit = int(min(max(2 * in_bytes + 8 * f32_block + (2 << 20), 16 << 20), 56 << 20))

    kern = functools.partial(kernel, n_rows=rows, block_rows=block_rows,
                             blocks_per_core=bpc, needs_tail_mask=needs_tail)
    out_shape = out_sd if n_out == 1 else tuple([out_sd] * n_out)
    out_specs = out_spec if n_out == 1 else tuple([out_spec] * n_out)
    return pl.pallas_call(
        kern,
        out_shape=out_shape,
        grid_spec=pltpu.PrefetchScalarGridSpec(
            num_scalar_prefetch=0,
            grid=(b, n_cores, bpc),
            in_specs=[in_spec] * len(bulks),
            out_specs=out_specs),
        compiler_params=pltpu.CompilerParams(
            dimension_semantics=("parallel", "parallel", "arbitrary"),
            vmem_limit_bytes=vmem_limit),
    )(*bulks)


def _psnr_mean(inputs, targets, valid_mask):
    n = math.prod(inputs.shape)
    block_rows_target = _target_rows(max(inputs.dtype.itemsize, targets.dtype.itemsize))
    x2 = inputs.reshape(1, n)
    y2 = targets.reshape(1, n)

    if valid_mask is None:
        bulks, tails, rows, block_rows = _prepare([x2, y2], 1, n, block_rows_target)
        sums = _partial_sums(_sq_sum_kernel, bulks, 1, rows, block_rows, 1)
        total = jnp.sum(sums)
        if tails is not None:
            tx, ty = tails
            total = total + jnp.sum((tx.astype(jnp.float32) - ty.astype(jnp.float32)) ** 2)
        mean = total / n
    else:
        m = valid_mask
        if m.dtype == jnp.bool_:
            m = m.astype(jnp.int8)        # 1 B/elem HBM stream instead of 4 B
        m2 = m.reshape(1, n)
        bulks, tails, rows, block_rows = _prepare([x2, y2, m2], 1, n, block_rows_target)
        sums, counts = _partial_sums(_masked_sq_sum_kernel, bulks, 2, rows, block_rows, 1)
        total = jnp.sum(sums)
        count = jnp.sum(counts)
        if tails is not None:
            tx, ty, tm = tails
            tw = tm.astype(jnp.float32)
            total = total + jnp.sum(((tx.astype(jnp.float32) - ty.astype(jnp.float32)) ** 2) * tw)
            count = count + jnp.sum(tw)
        # NOTE: an all-False mask gives 0/0 -> nan, same as torch's empty mean.
        mean = total / count

    # Tiny scalar epilogue (combine partials + log) runs as plain XLA.
    return -10.0 * jnp.log10(mean)


def _psnr_none(inputs, targets):
    b = inputs.shape[0]
    m_per = math.prod(inputs.shape[1:])
    block_rows_target = _target_rows(max(inputs.dtype.itemsize, targets.dtype.itemsize))
    x2 = inputs.reshape(b, m_per)
    y2 = targets.reshape(b, m_per)

    bulks, tails, rows, block_rows = _prepare([x2, y2], b, m_per, block_rows_target)
    sums = _partial_sums(_sq_sum_kernel, bulks, 1, rows, block_rows, b)
    total = jnp.sum(sums, axis=(1, 2, 3))
    if tails is not None:
        tx, ty = tails
        total = total + jnp.sum((tx.astype(jnp.float32) - ty.astype(jnp.float32)) ** 2, axis=1)
    mean = total / m_per
    return -10.0 * jnp.log10(mean)


def psnr(inputs, targets, valid_mask=None, reduction="mean"):
    assert reduction in ("mean", "none")
    if reduction == "mean":
        return _psnr_mean(inputs, targets, valid_mask)
    else:
        # TODO(synk): torch's `value[valid_mask]` with reduction='none' yields a
        # data-dependent-shape output; only the unmasked 'none' path is supported.
        assert valid_mask is None
        return _psnr_none(inputs, targets)


# ----------------------------------------------------------------------------
# reference (plain JAX) for sanity checking
# ----------------------------------------------------------------------------
def _psnr_ref(inputs, targets, valid_mask=None, reduction="mean"):
    value = (inputs.astype(jnp.float32) - targets.astype(jnp.float32)) ** 2
    if valid_mask is not None:
        m = valid_mask.astype(jnp.float32)
        mean = jnp.sum(value * m) / jnp.sum(m)
        return -10.0 * jnp.log10(mean)
    if reduction == "mean":
        return -10.0 * jnp.log10(jnp.mean(value))
    else:
        axes = tuple(range(1, value.ndim))
        return -10.0 * jnp.log10(jnp.mean(value, axis=axes))


if __name__ == "__main__":
    key = jax.random.PRNGKey(0)
    k1, k2, k3, k4, k5, k6, k7 = jax.random.split(key, 7)

    # small NCHW-like inputs [B, C, H, W] (single-block path)
    shape = (2, 4, 16, 16)
    inputs = jax.random.uniform(k1, shape, jnp.float32)
    targets = jax.random.uniform(k2, shape, jnp.float32)
    mask = jax.random.bernoulli(k3, 0.7, shape)

    out_mean = jax.block_until_ready(psnr(inputs, targets, reduction="mean"))
    ref_mean = _psnr_ref(inputs, targets, reduction="mean")
    assert jnp.allclose(out_mean, ref_mean, rtol=1e-5, atol=1e-5), (out_mean, ref_mean)

    out_masked = jax.block_until_ready(
        psnr(inputs, targets, valid_mask=mask, reduction="mean"))
    ref_masked = _psnr_ref(inputs, targets, valid_mask=mask, reduction="mean")
    assert jnp.allclose(out_masked, ref_masked, rtol=1e-5, atol=1e-5), (out_masked, ref_masked)

    out_none = jax.block_until_ready(psnr(inputs, targets, reduction="none"))
    ref_none = _psnr_ref(inputs, targets, reduction="none")
    assert out_none.shape == (shape[0],)
    assert jnp.allclose(out_none, ref_none, rtol=1e-5, atol=1e-5), (out_none, ref_none)

    # bf16 inputs (native-dtype DMA, in-kernel upcast)
    out_bf = jax.block_until_ready(
        psnr(inputs.astype(jnp.bfloat16), targets.astype(jnp.bfloat16), reduction="mean"))
    ref_bf = _psnr_ref(inputs.astype(jnp.bfloat16), targets.astype(jnp.bfloat16))
    assert jnp.allclose(out_bf, ref_bf, rtol=1e-4, atol=1e-4), (out_bf, ref_bf)

    # odd, non-lane-aligned small shape
    shape2 = (2, 3, 7, 5)
    a = jax.random.uniform(k4, shape2, jnp.float32)
    b = jax.random.uniform(k5, shape2, jnp.float32)
    assert jnp.allclose(jax.block_until_ready(psnr(a, b, reduction="mean")),
                        _psnr_ref(a, b, reduction="mean"), rtol=1e-5, atol=1e-5)
    assert jnp.allclose(jax.block_until_ready(psnr(a, b, reduction="none")),
                        _psnr_ref(a, b, reduction="none"), rtol=1e-5, atol=1e-5)

    # large unaligned input: multi-block, 2-core split, clamped duplicate block,
    # partial tail block and <128-element lane tail are all exercised.
    shape3 = (3, 700, 1001)   # 2,102,100 elements, not a multiple of 128
    xb = jax.random.uniform(k6, shape3, jnp.float32)
    yb = jax.random.uniform(k7, shape3, jnp.float32)
    mb = jax.random.bernoulli(k3, 0.6, shape3)
    out_big = jax.block_until_ready(psnr(xb, yb, reduction="mean"))
    assert jnp.allclose(out_big, _psnr_ref(xb, yb, reduction="mean"),
                        rtol=1e-4, atol=1e-4), out_big
    out_bigm = jax.block_until_ready(psnr(xb, yb, valid_mask=mb, reduction="mean"))
    assert jnp.allclose(out_bigm, _psnr_ref(xb, yb, valid_mask=mb, reduction="mean"),
                        rtol=1e-4, atol=1e-4), out_bigm

    # large 'none' reduction: per-batch multi-block + lane tail
    shape4 = (2, 3, 700, 501)  # 1,052,100 elements per batch element
    xn = jax.random.uniform(k1, shape4, jnp.float32)
    yn = jax.random.uniform(k2, shape4, jnp.float32)
    out_bign = jax.block_until_ready(psnr(xn, yn, reduction="none"))
    assert out_bign.shape == (shape4[0],)
    assert jnp.allclose(out_bign, _psnr_ref(xn, yn, reduction="none"),
                        rtol=1e-4, atol=1e-4), out_bign

    print("KERNEL_OK")
</pallas_src>

<mosaic_0001>
module attributes {stable_mosaic.version = 11 : i64} {
  func.func @_sq_sum_kernel(%arg0: i32, %arg1: i32, %arg2: i32, %arg3: memref<1x32x128xf32, #tpu.memory_space<vmem>>, %arg4: memref<1x32x128xf32, #tpu.memory_space<vmem>>, %arg5: memref<1x1x8x128xf32, #tpu.memory_space<vmem>>) attributes {dimension_semantics = [#tpu.dimension_semantics<parallel>, #tpu.dimension_semantics<parallel>, #tpu.dimension_semantics<arbitrary>], iteration_bounds = array<i64: 1, 1, 1>, scalar_prefetch = 0 : i64, scratch_operands = 0 : i64, tpu.core_type = #tpu.core_type<tc>, window_params = [{transform_indices = @transform_0, window_bounds = array<i64: 1, 32, 128>}, {transform_indices = @transform_1, window_bounds = array<i64: 1, 32, 128>}, {transform_indices = @transform_2, window_bounds = array<i64: 1, 1, 8, 128>}]} {
    %c0_i32 = arith.constant 0 : i32
    %0 = arith.cmpi eq, %arg2, %c0_i32 : i32
    %1 = arith.extui %0 : i1 to i32
    %c0_i32_0 = arith.constant 0 : i32
    %2 = arith.cmpi ne, %1, %c0_i32_0 : i32
    scf.if %2 {
      %cst_14 = arith.constant 0.000000e+00 : f32
      %15 = vector.broadcast %cst_14 : f32 to vector<1x1x8x128xf32>
      %c0_15 = arith.constant 0 : index
      %c0_16 = arith.constant 0 : index
      %c0_17 = arith.constant 0 : index
      %c0_18 = arith.constant 0 : index
      %16 = vector.load %arg5[%c0_15, %c0_16, %c0_17, %c0_18] : memref<1x1x8x128xf32, #tpu.memory_space<vmem>>, vector<1x1x8x128xf32>
      tpu.vector_store %arg5[%c0_15, %c0_16, %c0_17, %c0_18], %15 {strides = array<i32>} : memref<1x1x8x128xf32, #tpu.memory_space<vmem>>, vector<1x1x8x128xf32>,
    } else {
    }
    %c0 = arith.constant 0 : index
    %c0_1 = arith.constant 0 : index
    %c0_2 = arith.constant 0 : index
    %3 = vector.load %arg3[%c0, %c0_1, %c0_2] : memref<1x32x128xf32, #tpu.memory_space<vmem>>, vector<1x32x128xf32>
    %4 = vector.shape_cast %3 : vector<1x32x128xf32> to vector<32x128xf32>
    %c0_3 = arith.constant 0 : index
    %c0_4 = arith.constant 0 : index
    %c0_5 = arith.constant 0 : index
    %5 = vector.load %arg4[%c0_3, %c0_4, %c0_5] : memref<1x32x128xf32, #tpu.memory_space<vmem>>, vector<1x32x128xf32>
    %6 = vector.shape_cast %5 : vector<1x32x128xf32> to vector<32x128xf32>
    %7 = arith.subf %4, %6 : vector<32x128xf32>
    %8 = arith.mulf %7, %7 : vector<32x128xf32>
    %c0_6 = arith.constant 0 : index
    %c0_7 = arith.constant 0 : index
    %c0_8 = arith.constant 0 : index
    %c0_9 = arith.constant 0 : index
    %9 = vector.load %arg5[%c0_6, %c0_7, %c0_8, %c0_9] : memref<1x1x8x128xf32, #tpu.memory_space<vmem>>, vector<1x1x8x128xf32>
    %10 = vector.shape_cast %8 : vector<32x128xf32> to vector<4x8x128xf32>
    %cst = arith.constant dense<0.000000e+00> : vector<8x128xf32>
    %11 = vector.multi_reduction <add>, %10, %cst [0] : vector<4x8x128xf32> to vector<8x128xf32>
    %12 = vector.shape_cast %11 : vector<8x128xf32> to vector<1x1x8x128xf32>
    %13 = arith.addf %9, %12 : vector<1x1x8x128xf32>
    %c0_10 = arith.constant 0 : index
    %c0_11 = arith.constant 0 : index
    %c0_12 = arith.constant 0 : index
    %c0_13 = arith.constant 0 : index
    %14 = vector.load %arg5[%c0_10, %c0_11, %c0_12, %c0_13] : memref<1x1x8x128xf32, #tpu.memory_space<vmem>>, vector<1x1x8x128xf32>
    tpu.vector_store %arg5[%c0_10, %c0_11, %c0_12, %c0_13], %13 {strides = array<i32>} : memref<1x1x8x128xf32, #tpu.memory_space<vmem>>, vector<1x1x8x128xf32>,
    return
  }
  func.func @transform_0(%arg0: i32, %arg1: i32, %arg2: i32) -> (i32, i32, i32) {
    %c1_i32 = arith.constant 1 : i32
    %0 = arith.muli %arg1, %c1_i32 : i32
    %1 = arith.addi %0, %arg2 : i32
    %c0_i32 = arith.constant 0 : i32
    %2 = arith.minsi %1, %c0_i32 : i32
    %c0_i32_0 = arith.constant 0 : i32
    %c0_i32_1 = arith.constant 0 : i32
    return %arg0, %2, %c0_i32_0 : i32, i32, i32
  }
  func.func @transform_1(%arg0: i32, %arg1: i32, %arg2: i32) -> (i32, i32, i32) {
    %c1_i32 = arith.constant 1 : i32
    %0 = arith.muli %arg1, %c1_i32 : i32
    %1 = arith.addi %0, %arg2 : i32
    %c0_i32 = arith.constant 0 : i32
    %2 = arith.minsi %1, %c0_i32 : i32
    %c0_i32_0 = arith.constant 0 : i32
    %c0_i32_1 = arith.constant 0 : i32
    return %arg0, %2, %c0_i32_0 : i32, i32, i32
  }
  func.func @transform_2(%arg0: i32, %arg1: i32, %arg2: i32) -> (i32, i32, i32, i32) {
    %c0_i32 = arith.constant 0 : i32
    %c0_i32_0 = arith.constant 0 : i32
    %c0_i32_1 = arith.constant 0 : i32
    return %arg0, %arg1, %c0_i32, %c0_i32_0 : i32, i32, i32, i32
  }
}

</mosaic_0001>

<llo_original>
// kernel: tpu_custom_call.1
$region0: #{tpu_custom_call.1}
  #allocation0 [shape = 'u32[]', space=smem, size = 0x4, offset = 0x4, fixed_abs, tag = 'smem constant byte address 0x4 - core index']
  #allocation1 [shape = 'u32[144,128]{1,0:T(1,128)}', space=vmem, size = 0x12000, scoped, tag = 'internal scratch']
  %s0 = inlined_call_operand.hbm [shape: f32[1,32,128], index: 0, kind: input, shape index: {}]
  %s1 = inlined_call_operand.hbm [shape: f32[1,32,128], index: 1, kind: input, shape index: {}]
  %s2 = inlined_call_operand.hbm [shape: f32[1,1,8,128], index: 2, kind: output, shape index: {}]
  %s3 = sld [smem:[#allocation0]]
  $region30: #{tpu_custom_call.1} parent=0
    _
  %s5 = ssub.s32 1, %s3
  %s6 = scalar_select 0, %s5, %s3
  $region1: #{tpu_custom_call.1} parent=0
    #allocation2 [shape = 'u8[16384]{0}', space=vmem, size = 0x4000, scoped, tag = 'input window, operand 0, single buffered']
    #allocation3 [shape = 's32[1]{0}', space=sflag, size = 0x4, scoped, tag = 'scoped memory for tpu_custom_call.1']
    #allocation4 [shape = 's32[1]{0}', space=sflag, size = 0x4, scoped, tag = 'scoped memory for tpu_custom_call.1']
    #allocation5 [shape = 'u8[16384]{0}', space=vmem, size = 0x4000, scoped, tag = 'input window, operand 1, single buffered']
    #allocation6 [shape = 's32[1]{0}', space=sflag, size = 0x4, scoped, tag = 'scoped memory for tpu_custom_call.1']
    #allocation7 [shape = 'u8[4096]{0}', space=vmem, size = 0x1000, scoped, tag = 'output window, operand 0, single buffered']
    %7 = vsyncpa [#allocation3], 0
    %8 = vsyncpa [#allocation6], 0
    %9 = vsyncpa [#allocation4], 0
    // Predicated region
    $region2: #{tpu_custom_call.1} parent=1 // pred_check
      _
    $region3: #{tpu_custom_call.1} parent=1 // pred_check_branch
      %11 = sbr.rel (0) target = $region5
    $region4: #{tpu_custom_call.1} parent=1 // pred_region
      %s12 = sadd.s32 0, 0
      %p13 = scmp.lt.s32.totalorder %s12, 0
      %s14 = scalar_select %p13, %s12, 0
      %s15 = smul.u32 4, %s14
      %s17 = ssub.s32 512, 512
      %18 = vsyncadd [#allocation3], %s17
      %s19 = smul.addr %s15, 128
      %s20 = scalar_lea.hbm %s0, %s19
      %s21 = sshll.u32 [#allocation2], 4
      %s22 = int_to_ptr.vmem [resolvable:$true] %s21
      %27 = dma.hbm_to_vmem [thread:$0]  %s20, 512, %s22, [#allocation3], 128, 128, 8
    $region5: #{tpu_custom_call.1} parent=1 // pred_fallthru
      _
    // Predicated region
    $region6: #{tpu_custom_call.1} parent=1 // pred_check
      _
    $region7: #{tpu_custom_call.1} parent=1 // pred_check_branch
      %29 = sbr.rel (0) target = $region9
    $region8: #{tpu_custom_call.1} parent=1 // pred_region
      %s30 = sadd.s32 0, 0
      %p31 = scmp.lt.s32.totalorder %s30, 0
      %s32 = scalar_select %p31, %s30, 0
      %s33 = smul.u32 4, %s32
      %s35 = ssub.s32 512, 512
      %36 = vsyncadd [#allocation6], %s35
      %s37 = smul.addr %s33, 128
      %s38 = scalar_lea.hbm %s1, %s37
      %s39 = sshll.u32 [#allocation5], 4
      %s40 = int_to_ptr.vmem [resolvable:$true] %s39
      %45 = dma.hbm_to_vmem [thread:$0]  %s38, 512, %s40, [#allocation6], 128, 128, 8
    $region9: #{tpu_custom_call.1} parent=1 // pred_fallthru
      _
    // Predicated region
    $region10: #{tpu_custom_call.1} parent=1 // pred_check
      _
    $region11: #{tpu_custom_call.1} parent=1 // pred_check_branch
      %47 = sbr.rel (0) target = $region13
    $region12: #{tpu_custom_call.1} parent=1 // pred_region
      %48 = dma.done [#allocation3], 512
    $region13: #{tpu_custom_call.1} parent=1 // pred_fallthru
      _
    // Predicated region
    $region14: #{tpu_custom_call.1} parent=1 // pred_check
      _
    $region15: #{tpu_custom_call.1} parent=1 // pred_check_branch
      %50 = sbr.rel (0) target = $region17
    $region16: #{tpu_custom_call.1} parent=1 // pred_region
      %51 = dma.done [#allocation6], 512
    $region17: #{tpu_custom_call.1} parent=1 // pred_fallthru
      _
    %s52 = sadd.s32 0, 0
    %p53 = scmp.lt.s32.totalorder %s52, 0
    %s54 = scalar_select %p53, %s52, 0
    %s55 = smul.u32 4, %s54
    %s56 = sadd.s32 0, 0
    %p57 = scmp.lt.s32.totalorder %s56, 0
    %s58 = scalar_select %p57, %s56, 0
    %s59 = smul.u32 4, %s58
    %p60 = scmp.eq.s32.totalorder 0, 0
    // Predicated region
    $region18: #{tpu_custom_call.1} parent=1 // pred_check
      %p61 = pneg %p60
    $region19: #{tpu_custom_call.1} parent=1 // pred_check_branch
      %63 = sbr.rel (%p61) target = $region21
    $region20: #{tpu_custom_call.1} parent=1 // pred_region
      %64 = vst [vmem:[#allocation7] sm:$0xff] 0.0
    $region21: #{tpu_custom_call.1} parent=1 // pred_fallthru
      _
    %v65 = vld [vmem:[#allocation2] sm:$0xff]
    %v66 = vld [vmem:[#allocation2 + $0x8] sm:$0xff]
    %v67 = vld [vmem:[#allocation2 + $0x10] sm:$0xff]
    %v68 = vld [vmem:[#allocation2 + $0x18] sm:$0xff]
    %v69 = vld [vmem:[#allocation5] sm:$0xff]
    %v70 = vld [vmem:[#allocation5 + $0x8] sm:$0xff]
    %v71 = vld [vmem:[#allocation5 + $0x10] sm:$0xff]
    %v72 = vld [vmem:[#allocation5 + $0x18] sm:$0xff]
    %v73 = vsub.f32 %v65, %v69
    %v74 = vsub.f32 %v66, %v70
    %v75 = vsub.f32 %v67, %v71
    %v76 = vsub.f32 %v68, %v72
    %v77 = vmul.f32 %v73, %v73
    %v78 = vmul.f32 %v74, %v74
    %v79 = vmul.f32 %v75, %v75
    %v80 = vmul.f32 %v76, %v76
    %v81 = vld [vmem:[#allocation7] sm:$0xff]
    %v82 = vadd.f32 %v77, %v78
    %v83 = vadd.f32 %v82, %v79
    %v84 = vadd.f32 %v83, %v80
    %v85 = vadd.f32 %v81, %v84
    %86 = vst [vmem:[#allocation7] sm:$0xff] %v85
    // Predicated region
    $region22: #{tpu_custom_call.1} parent=1 // pred_check
      _
    $region23: #{tpu_custom_call.1} parent=1 // pred_check_branch
      %88 = sbr.rel (0) target = $region25
    $region24: #{tpu_custom_call.1} parent=1 // pred_region
      %s90 = ssub.s32 128, 128
      %91 = vsyncadd [#allocation4], %s90
      %s93 = sshll.u32 [#allocation7], 4
      %s94 = int_to_ptr.vmem [resolvable:$true] %s93
      %96 = dma.vmem_to_hbm [thread:$0]  %s94, 128, %s2, [#allocation4]
    $region25: #{tpu_custom_call.1} parent=1 // pred_fallthru
      _
    // Predicated region
    $region26: #{tpu_custom_call.1} parent=1 // pred_check
      _
    $region27: #{tpu_custom_call.1} parent=1 // pred_check_branch
      %98 = sbr.rel (0) target = $region29
    $region28: #{tpu_custom_call.1} parent=1 // pred_region
      %99 = dma.done [#allocation4], 128
    $region29: #{tpu_custom_call.1} parent=1 // pred_fallthru
      _
    %100 = vsyncpa [#allocation3], 1
    %101 = vsyncpa [#allocation6], 1
    %102 = vsyncpa [#allocation4], 1

</llo_original>
